<compile_context>
chip_gen: v7x
topology: tpu7x:2x2x1
jax: 0.10.0
libtpu: 0.0.40
codegen_flags: <defaults>
</compile_context>

<pallas_src>
import functools

import jax
import jax.numpy as jnp
from jax.experimental import pallas as pl
from jax.experimental.pallas import tpu as pltpu


def _das_kernel(x_ref, p_ref, o_ref, *, smoothing):
    x = x_ref[...].astype(jnp.float32)         # (tile_rows, H_eff)
    p = p_ref[...].astype(jnp.float32)         # (4, H_eff) stacked params
    alpha_neg = p[0:1, :]
    delta = p[1:2, :]                          # alpha_pos - alpha_neg (precomputed)
    weight = p[2:3, :]
    bias = p[3:4, :]

    sig = jax.nn.sigmoid(smoothing * x)        # exp -> EUP
    alpha = alpha_neg + delta * sig
    denom = 1.0 + alpha * jnp.abs(x)
    out = x * pl.reciprocal(denom, approx=False)   # reciprocal -> EUP, exact
    out = out * weight + bias
    o_ref[...] = out.astype(o_ref.dtype)


def dynamic_asymmetric_softsign(x, alpha_pos, alpha_neg, weight=None, bias=None,
                                smoothing=10.0, vmem_budget_bytes=16 * 1024 * 1024):
    """x: (..., H); params: (H,). Returns array with same shape/dtype as x."""
    orig_shape = x.shape
    H = orig_shape[-1]
    R = 1
    for d in orig_shape[:-1]:
        R *= d
    x2 = x.reshape(R, H)

    # --- lane-dense folding: make the last dim a multiple of 128 when H < 128 ---
    k = 1
    if H < 128 and (128 % H == 0):
        k_cand = 128 // H
        if k_cand > 0 and R % k_cand == 0:
            k = k_cand
    H_eff = H * k
    R_eff = R // k
    if k > 1:
        x2 = x2.reshape(R_eff, H_eff)

    # --- fuse params into one (4, H_eff) stack: [alpha_neg, delta, weight, bias] ---
    pdt = jnp.float32
    an = alpha_neg.astype(pdt).reshape(1, H)
    delta = (alpha_pos.astype(pdt) - alpha_neg.astype(pdt)).reshape(1, H)
    w = (weight.astype(pdt) if weight is not None else jnp.ones((H,), pdt)).reshape(1, H)
    b = (bias.astype(pdt) if bias is not None else jnp.zeros((H,), pdt)).reshape(1, H)
    params = jnp.concatenate([an, delta, w, b], axis=0)          # (4, H)
    if k > 1:
        params = jnp.tile(params, (1, k))                        # (4, H_eff)

    # --- pick the largest row tile that fits the VMEM budget (v7x-safe) ---
    itemsize = jnp.dtype(x2.dtype).itemsize
    min_rows = {4: 8, 2: 16, 1: 32}.get(itemsize, 8)             # sublane minimum per dtype
    # x block + out block, each double-buffered  ->  4 * row_bytes live per row
    bytes_per_row = 4 * H_eff * itemsize
    tile_rows = max(min_rows, min(2048, vmem_budget_bytes // max(bytes_per_row, 1)))
    tile_rows = (tile_rows // min_rows) * min_rows
    if tile_rows >= R_eff:
        tile_rows = R_eff                                        # block == full array
        grid = (1,)
    else:
        grid = (pl.cdiv(R_eff, tile_rows),)                      # ragged last block OK (masked)

    kernel = functools.partial(_das_kernel, smoothing=float(smoothing))

    out = pl.pallas_call(
        kernel,
        out_shape=jax.ShapeDtypeStruct((R_eff, H_eff), x.dtype),
        grid_spec=pltpu.PrefetchScalarGridSpec(
            num_scalar_prefetch=0,
            grid=grid,
            in_specs=[
                pl.BlockSpec((tile_rows, H_eff), lambda i: (i, 0)),
                pl.BlockSpec((4, H_eff), lambda i: (0, 0)),
            ],
            out_specs=pl.BlockSpec((tile_rows, H_eff), lambda i: (i, 0)),
        ),
        compiler_params=pltpu.CompilerParams(
            dimension_semantics=("parallel",),       # shards across 2 TCs on v7x
            vmem_limit_bytes=32 * 1024 * 1024,       # explicit; leaves headroom on v7x
        ),
    )(x2, params)

    return out.reshape(orig_shape)


def _reference(x, alpha_pos, alpha_neg, weight, bias, smoothing=10.0):
    sig = jax.nn.sigmoid(smoothing * x)
    alpha = alpha_neg + (alpha_pos - alpha_neg) * sig
    out = x / (1.0 + alpha * jnp.abs(x))
    return out * weight + bias


if __name__ == "__main__":
    key = jax.random.PRNGKey(0)

    B, S, H = 2, 8, 32            # x: (batch, seq, hidden); normalized_shape = H
    alpha_init_value = 0.5
    smoothing = 10.0

    x = jax.random.normal(key, (B, S, H), dtype=jnp.float32)

    # deterministic parameter init, exactly as in the module's __init__
    alpha_pos = jnp.ones((H,), jnp.float32) * alpha_init_value
    alpha_neg = jnp.ones((H,), jnp.float32) * alpha_init_value
    weight = jnp.ones((H,), jnp.float32)
    bias = jnp.zeros((H,), jnp.float32)

    out = dynamic_asymmetric_softsign(x, alpha_pos, alpha_neg, weight, bias,
                                      smoothing=smoothing)
    out = jax.block_until_ready(out)

    ref = _reference(x, alpha_pos, alpha_neg, weight, bias, smoothing=smoothing)
    assert out.shape == x.shape and out.dtype == x.dtype
    assert jnp.allclose(out, ref, atol=1e-5, rtol=1e-5), "mismatch vs reference"

    print("KERNEL_OK")
</pallas_src>

<mosaic_0001>
module attributes {stable_mosaic.version = 11 : i64} {
  func.func @_das_kernel(%arg0: i32, %arg1: memref<4x128xf32, #tpu.memory_space<vmem>>, %arg2: memref<4x128xf32, #tpu.memory_space<vmem>>, %arg3: memref<4x128xf32, #tpu.memory_space<vmem>>) attributes {dimension_semantics = [#tpu.dimension_semantics<parallel>], iteration_bounds = array<i64: 1>, scalar_prefetch = 0 : i64, scratch_operands = 0 : i64, tpu.core_type = #tpu.core_type<tc>, window_params = [{transform_indices = @transform_0, window_bounds = array<i64: 4, 128>}, {pipeline_mode = #tpu.pipeline_mode<synchronous>, transform_indices = @transform_1, window_bounds = array<i64: 4, 128>}, {transform_indices = @transform_2, window_bounds = array<i64: 4, 128>}]} {
    %c0 = arith.constant 0 : index
    %c0_0 = arith.constant 0 : index
    %0 = vector.load %arg1[%c0, %c0_0] : memref<4x128xf32, #tpu.memory_space<vmem>>, vector<4x128xf32>
    %c0_1 = arith.constant 0 : index
    %c0_2 = arith.constant 0 : index
    %1 = vector.load %arg2[%c0_1, %c0_2] : memref<4x128xf32, #tpu.memory_space<vmem>>, vector<4x128xf32>
    %2 = vector.extract_strided_slice %1 {offsets = [0, 0], sizes = [1, 128], strides = [1, 1]} : vector<4x128xf32> to vector<1x128xf32>
    %3 = vector.extract_strided_slice %1 {offsets = [1, 0], sizes = [1, 128], strides = [1, 1]} : vector<4x128xf32> to vector<1x128xf32>
    %4 = vector.extract_strided_slice %1 {offsets = [2, 0], sizes = [1, 128], strides = [1, 1]} : vector<4x128xf32> to vector<1x128xf32>
    %5 = vector.extract_strided_slice %1 {offsets = [3, 0], sizes = [1, 128], strides = [1, 1]} : vector<4x128xf32> to vector<1x128xf32>
    %cst = arith.constant 1.000000e+01 : f32
    %6 = vector.broadcast %cst : f32 to vector<4x128xf32>
    %7 = arith.mulf %6, %0 : vector<4x128xf32>
    %8 = arith.negf %7 : vector<4x128xf32>
    %9 = math.exp %8 : vector<4x128xf32>
    %cst_3 = arith.constant 1.000000e+00 : f32
    %10 = vector.broadcast %cst_3 : f32 to vector<4x128xf32>
    %11 = arith.addf %10, %9 : vector<4x128xf32>
    %12 = arith.divf %10, %11 : vector<4x128xf32>
    %13 = vector.broadcast %3 : vector<1x128xf32> to vector<4x128xf32>
    %14 = arith.mulf %13, %12 : vector<4x128xf32>
    %15 = vector.broadcast %2 : vector<1x128xf32> to vector<4x128xf32>
    %16 = arith.addf %15, %14 : vector<4x128xf32>
    %17 = math.absf %0 : vector<4x128xf32>
    %18 = arith.mulf %16, %17 : vector<4x128xf32>
    %cst_4 = arith.constant 1.000000e+00 : f32
    %19 = vector.broadcast %cst_4 : f32 to vector<4x128xf32>
    %20 = arith.addf %19, %18 : vector<4x128xf32>
    %21 = tpu.reciprocal %20 : vector<4x128xf32> -> vector<4x128xf32>
    %22 = arith.mulf %0, %21 : vector<4x128xf32>
    %23 = vector.broadcast %4 : vector<1x128xf32> to vector<4x128xf32>
    %24 = arith.mulf %22, %23 : vector<4x128xf32>
    %25 = vector.broadcast %5 : vector<1x128xf32> to vector<4x128xf32>
    %26 = arith.addf %24, %25 : vector<4x128xf32>
    %c0_5 = arith.constant 0 : index
    %c0_6 = arith.constant 0 : index
    %27 = vector.load %arg3[%c0_5, %c0_6] : memref<4x128xf32, #tpu.memory_space<vmem>>, vector<4x128xf32>
    tpu.vector_store %arg3[%c0_5, %c0_6], %26 {strides = array<i32>} : memref<4x128xf32, #tpu.memory_space<vmem>>, vector<4x128xf32>,
    return
  }
  func.func @transform_0(%arg0: i32) -> (i32, i32) {
    %c0_i32 = arith.constant 0 : i32
    %c0_i32_0 = arith.constant 0 : i32
    return %arg0, %c0_i32 : i32, i32
  }
  func.func @transform_1(%arg0: i32) -> (i32, i32) {
    %c0_i32 = arith.constant 0 : i32
    %c0_i32_0 = arith.constant 0 : i32
    %c0_i32_1 = arith.constant 0 : i32
    return %c0_i32, %c0_i32_0 : i32, i32
  }
  func.func @transform_2(%arg0: i32) -> (i32, i32) {
    %c0_i32 = arith.constant 0 : i32
    %c0_i32_0 = arith.constant 0 : i32
    return %arg0, %c0_i32 : i32, i32
  }
}

</mosaic_0001>

<llo_original>
// kernel: tpu_custom_call.1
$region0: #{tpu_custom_call.1}
  #allocation0 [shape = 'u32[]', space=smem, size = 0x4, offset = 0x4, fixed_abs, tag = 'smem constant byte address 0x4 - core index']
  #allocation1 [shape = 'u32[144,128]{1,0:T(1,128)}', space=vmem, size = 0x12000, scoped, tag = 'internal scratch']
  %s0 = inlined_call_operand.hbm [shape: f32[4,128], index: 0, kind: input, shape index: {}]
  %s1 = inlined_call_operand.hbm [shape: f32[4,128], index: 1, kind: input, shape index: {}]
  %s2 = inlined_call_operand.hbm [shape: f32[4,128], index: 2, kind: output, shape index: {}]
  %s3 = sld [smem:[#allocation0]]
  $region26: #{tpu_custom_call.1} parent=0
    _
  %s5 = ssub.s32 1, %s3
  %s6 = scalar_select 0, %s5, %s3
  $region1: #{tpu_custom_call.1} parent=0
    #allocation2 [shape = 'u8[2048]{0}', space=vmem, size = 0x800, scoped, tag = 'input window, operand 0, single buffered']
    #allocation3 [shape = 's32[1]{0}', space=sflag, size = 0x4, scoped, tag = 'scoped memory for tpu_custom_call.1']
    #allocation4 [shape = 's32[1]{0}', space=sflag, size = 0x4, scoped, tag = 'scoped memory for tpu_custom_call.1']
    #allocation5 [shape = 'u8[2048]{0}', space=vmem, size = 0x800, scoped, tag = 'input window, operand 1, single buffered']
    #allocation6 [shape = 's32[1]{0}', space=sflag, size = 0x4, scoped, tag = 'scoped memory for tpu_custom_call.1']
    #allocation7 [shape = 'u8[2048]{0}', space=vmem, size = 0x800, scoped, tag = 'output window, operand 0, single buffered']
    %7 = vsyncpa [#allocation3], 0
    %8 = vsyncpa [#allocation6], 0
    %9 = vsyncpa [#allocation4], 0
    // Predicated region
    $region2: #{tpu_custom_call.1} parent=1 // pred_check
      _
    $region3: #{tpu_custom_call.1} parent=1 // pred_check_branch
      %11 = sbr.rel (0) target = $region5
    $region4: #{tpu_custom_call.1} parent=1 // pred_region
      %s13 = ssub.s32 64, 64
      %14 = vsyncadd [#allocation3], %s13
      %s16 = sshll.u32 [#allocation2], 4
      %s17 = int_to_ptr.vmem [resolvable:$true] %s16
      %19 = dma.hbm_to_vmem [thread:$0]  %s0, 64, %s17, [#allocation3]
    $region5: #{tpu_custom_call.1} parent=1 // pred_fallthru
      _
    // Predicated region
    $region6: #{tpu_custom_call.1} parent=1 // pred_check
      _
    $region7: #{tpu_custom_call.1} parent=1 // pred_check_branch
      %21 = sbr.rel (0) target = $region9
    $region8: #{tpu_custom_call.1} parent=1 // pred_region
      %s23 = ssub.s32 64, 64
      %24 = vsyncadd [#allocation6], %s23
      %s26 = sshll.u32 [#allocation5], 4
      %s27 = int_to_ptr.vmem [resolvable:$true] %s26
      %29 = dma.hbm_to_vmem [thread:$0]  %s1, 64, %s27, [#allocation6]
    $region9: #{tpu_custom_call.1} parent=1 // pred_fallthru
      _
    // Predicated region
    $region10: #{tpu_custom_call.1} parent=1 // pred_check
      _
    $region11: #{tpu_custom_call.1} parent=1 // pred_check_branch
      %31 = sbr.rel (0) target = $region13
    $region12: #{tpu_custom_call.1} parent=1 // pred_region
      %32 = dma.done [#allocation3], 64
    $region13: #{tpu_custom_call.1} parent=1 // pred_fallthru
      _
    // Predicated region
    $region14: #{tpu_custom_call.1} parent=1 // pred_check
      _
    $region15: #{tpu_custom_call.1} parent=1 // pred_check_branch
      %34 = sbr.rel (0) target = $region17
    $region16: #{tpu_custom_call.1} parent=1 // pred_region
      %35 = dma.done [#allocation6], 64
    $region17: #{tpu_custom_call.1} parent=1 // pred_fallthru
      _
    %v36 = vld [vmem:[#allocation2] sm:$0xf]
    %v37 = vld [vmem:[#allocation5] sm:$0xf]
    %v38 = vmul.f32 %v36, 10.0
    %v39 = vxor.u32 %v38, 2147483648
    %v40 = vmul.f32 %v39, 1.442695
    %v41 = vpow.pop %v40
    %v42 = vadd.f32 %v41, 1.0
    %v43 = vrcp.pop %v42
    %v44 = vmul.f32 1.0, %v43
    %v45 = vlaneseq
    %v46 = vshrl.u32 %v45, 7
    %v47 = vsub.s32 1, %v46
    %v48 = vrot.slane %v37, %v47
    %v49 = vmul.f32 %v48, %v44
    %v50 = vlaneseq
    %v51 = vshrl.u32 %v50, 7
    %v52 = vsub.s32 0, %v51
    %v53 = vrot.slane %v37, %v52
    %v54 = vadd.f32 %v53, %v49
    %v55 = vand.u32 2147483647, %v36
    %v56 = vmul.f32 %v54, %v55
    %v57 = vadd.f32 %v56, 1.0
    %v58 = vrcp.pop %v57
    %v59 = vmul.f32 %v36, %v58
    %v60 = vlaneseq
    %v61 = vshrl.u32 %v60, 7
    %v62 = vsub.s32 2, %v61
    %v63 = vrot.slane %v37, %v62
    %v64 = vmul.f32 %v59, %v63
    %v65 = vlaneseq
    %v66 = vshrl.u32 %v65, 7
    %v67 = vsub.s32 3, %v66
    %v68 = vrot.slane %v37, %v67
    %v69 = vadd.f32 %v64, %v68
    %70 = vst [vmem:[#allocation7] sm:$0xf] %v69
    // Predicated region
    $region18: #{tpu_custom_call.1} parent=1 // pred_check
      _
    $region19: #{tpu_custom_call.1} parent=1 // pred_check_branch
      %72 = sbr.rel (0) target = $region21
    $region20: #{tpu_custom_call.1} parent=1 // pred_region
      %s74 = ssub.s32 64, 64
      %75 = vsyncadd [#allocation4], %s74
      %s77 = sshll.u32 [#allocation7], 4
      %s78 = int_to_ptr.vmem [resolvable:$true] %s77
      %80 = dma.vmem_to_hbm [thread:$0]  %s78, 64, %s2, [#allocation4]
    $region21: #{tpu_custom_call.1} parent=1 // pred_fallthru
      _
    // Predicated region
    $region22: #{tpu_custom_call.1} parent=1 // pred_check
      _
    $region23: #{tpu_custom_call.1} parent=1 // pred_check_branch
      %82 = sbr.rel (0) target = $region25
    $region24: #{tpu_custom_call.1} parent=1 // pred_region
      %83 = dma.done [#allocation4], 64
    $region25: #{tpu_custom_call.1} parent=1 // pred_fallthru
      _
    %84 = vsyncpa [#allocation3], 1
    %85 = vsyncpa [#allocation6], 1
    %86 = vsyncpa [#allocation4], 1

</llo_original>
